<compile_context>
chip_gen: v7x
topology: tpu7x:2x2x1
jax: 0.10.0
libtpu: 0.0.40
codegen_flags: <defaults>
</compile_context>

<pallas_src>
import math

import numpy as np
import jax
import jax.numpy as jnp
from jax.experimental import pallas as pl
from jax.experimental.pallas import tpu as pltpu


# Per-grid-step VMEM budget for the live blocks (a + b + out) of one step.
# ~6 MiB -> ~4 MiB of input per step (amortizes the ~0.35 us/step overhead),
# x2 double-buffering = 12 MiB, within every generation's scoped VMEM.
_STEP_BUDGET = 6 * 1024 * 1024


def _sublane(dtype) -> int:
    # dtype-native sublane multiple: 8 for f32, 16 for bf16/f16, 32 for int8/fp8
    return max(8, 32 // jnp.dtype(dtype).itemsize)


def _round_up(x: int, m: int) -> int:
    return ((x + m - 1) // m) * m


def _vmem_limit(per_step_bytes: int) -> int:
    # double-buffered blocks + 50% headroom; >= 32 MiB, <= 64 MiB (v7x physical)
    need = int(per_step_bytes * 2 * 1.5)
    return int(min(max(need, 32 * 1024 * 1024), 64 * 1024 * 1024))


# ---------------------------------------------------------------------------
# Kernels
# ---------------------------------------------------------------------------
def _glu_split_kernel(a_ref, b_ref, o_ref):
    """Two pre-split blocks (same shape as the output block)."""
    a = a_ref[...]
    b = b_ref[...]
    if jnp.issubdtype(a.dtype, jnp.floating):
        a = a.astype(jnp.float32)
        b = b.astype(jnp.float32)
    o_ref[...] = (a * jax.nn.sigmoid(b)).astype(o_ref.dtype)


def _glu_fused_last_kernel(x_ref, o_ref):
    """Fallback: (tile_r, 2H) block, split in-kernel along lanes."""
    h = o_ref.shape[-1]
    x = x_ref[...]
    a = x[:, :h]
    b = x[:, h:]
    if jnp.issubdtype(x.dtype, jnp.floating):
        a = a.astype(jnp.float32)
        b = b.astype(jnp.float32)
    o_ref[...] = (a * jax.nn.sigmoid(b)).astype(o_ref.dtype)


def _glu_fused_mid_kernel(x_ref, o_ref):
    """Fallback: (tile_o, 2C, inner) block, split in-kernel along sublanes."""
    c = o_ref.shape[1]
    x = x_ref[...]
    a = x[:, :c, :]
    b = x[:, c:, :]
    if jnp.issubdtype(x.dtype, jnp.floating):
        a = a.astype(jnp.float32)
        b = b.astype(jnp.float32)
    o_ref[...] = (a * jax.nn.sigmoid(b)).astype(o_ref.dtype)


# ---------------------------------------------------------------------------
# dim == last axis: flatten to (rows, 2H), split along the lane axis
# ---------------------------------------------------------------------------
def _glu_last_dim(inputs, h):
    lead = inputs.shape[:-1]
    rows = math.prod(lead) if lead else 1
    two_h = 2 * h
    x2 = inputs.reshape(rows, two_h)
    itemsize = jnp.dtype(inputs.dtype).itemsize
    sub = _sublane(inputs.dtype)

    if h % 128 == 0:
        # BlockSpec-level split: both halves are lane-aligned windows of x2.
        tile_h = h
        # Tile the H axis only when even a minimal-row block overflows budget.
        while tile_h % 256 == 0 and 3 * sub * tile_h * itemsize > _STEP_BUDGET:
            tile_h //= 2
        tile_r = max(sub, (_STEP_BUDGET // (3 * tile_h * itemsize)) // sub * sub)
        tile_r = min(tile_r, _round_up(rows, sub))
        gate_off = h // tile_h  # gate half starts at this lane-block index
        grid = (pl.cdiv(rows, tile_r), h // tile_h)
        per_step = 3 * tile_r * tile_h * itemsize

        out2 = pl.pallas_call(
            _glu_split_kernel,
            out_shape=jax.ShapeDtypeStruct((rows, h), inputs.dtype),
            grid=grid,
            in_specs=[
                pl.BlockSpec((tile_r, tile_h), lambda i, j: (i, j)),
                pl.BlockSpec((tile_r, tile_h),
                             lambda i, j, off=gate_off: (i, j + off)),
            ],
            out_specs=pl.BlockSpec((tile_r, tile_h), lambda i, j: (i, j)),
            compiler_params=pltpu.CompilerParams(
                dimension_semantics=("parallel", "parallel"),
                vmem_limit_bytes=_vmem_limit(per_step)),
        )(x2, x2)
    else:
        # H not lane-aligned: keep the full 2H extent per block (no relayout
        # cost is avoidable here) and split in-kernel.
        tile_r = max(sub, (_STEP_BUDGET // (3 * h * itemsize)) // sub * sub)
        tile_r = min(tile_r, _round_up(rows, sub))
        grid = (pl.cdiv(rows, tile_r),)
        per_step = 3 * tile_r * h * itemsize

        out2 = pl.pallas_call(
            _glu_fused_last_kernel,
            out_shape=jax.ShapeDtypeStruct((rows, h), inputs.dtype),
            grid=grid,
            in_specs=[pl.BlockSpec((tile_r, two_h), lambda i: (i, 0))],
            out_specs=pl.BlockSpec((tile_r, h), lambda i: (i, 0)),
            compiler_params=pltpu.CompilerParams(
                dimension_semantics=("parallel",),
                vmem_limit_bytes=_vmem_limit(per_step)),
        )(x2)

    return out2.reshape(*lead, h)


# ---------------------------------------------------------------------------
# dim != last axis: flatten to (outer, 2C, inner), split along the middle axis
# (no moveaxis / transposes; trailing dims stay lane-dense)
# ---------------------------------------------------------------------------
def _glu_middle_dim(inputs, dim, c):
    shape = inputs.shape
    outer = math.prod(shape[:dim]) if dim > 0 else 1
    inner = math.prod(shape[dim + 1:])
    two_c = 2 * c
    x3 = inputs.reshape(outer, two_c, inner)
    itemsize = jnp.dtype(inputs.dtype).itemsize
    sub = _sublane(inputs.dtype)

    if c % sub == 0:
        # BlockSpec-level split along the sublane (middle) axis.
        tile_c = c
        while tile_c % (2 * sub) == 0 and 3 * tile_c * inner * itemsize > _STEP_BUDGET:
            tile_c //= 2
        tile_o = max(1, _STEP_BUDGET // (3 * tile_c * inner * itemsize))
        tile_o = min(tile_o, outer)
        gate_off = c // tile_c
        grid = (pl.cdiv(outer, tile_o), c // tile_c)
        per_step = 3 * tile_o * tile_c * inner * itemsize

        out3 = pl.pallas_call(
            _glu_split_kernel,
            out_shape=jax.ShapeDtypeStruct((outer, c, inner), inputs.dtype),
            grid=grid,
            in_specs=[
                pl.BlockSpec((tile_o, tile_c, inner), lambda i, j: (i, j, 0)),
                pl.BlockSpec((tile_o, tile_c, inner),
                             lambda i, j, off=gate_off: (i, j + off, 0)),
            ],
            out_specs=pl.BlockSpec((tile_o, tile_c, inner),
                                   lambda i, j: (i, j, 0)),
            compiler_params=pltpu.CompilerParams(
                dimension_semantics=("parallel", "parallel"),
                vmem_limit_bytes=_vmem_limit(per_step)),
        )(x3, x3)
    else:
        # C not a sublane multiple: fall back to full-2C blocks, split in-kernel.
        tile_o = max(1, _STEP_BUDGET // (3 * c * inner * itemsize))
        tile_o = min(tile_o, outer)
        grid = (pl.cdiv(outer, tile_o),)
        per_step = 3 * tile_o * c * inner * itemsize

        out3 = pl.pallas_call(
            _glu_fused_mid_kernel,
            out_shape=jax.ShapeDtypeStruct((outer, c, inner), inputs.dtype),
            grid=grid,
            in_specs=[pl.BlockSpec((tile_o, two_c, inner), lambda i: (i, 0, 0))],
            out_specs=pl.BlockSpec((tile_o, c, inner), lambda i: (i, 0, 0)),
            compiler_params=pltpu.CompilerParams(
                dimension_semantics=("parallel",),
                vmem_limit_bytes=_vmem_limit(per_step)),
        )(x3)

    return out3.reshape(shape[:dim] + (c,) + shape[dim + 1:])


# ---------------------------------------------------------------------------
# Public wrapper (matches torch GLU(dim).forward)
# ---------------------------------------------------------------------------
def glu_pallas(inputs, dim=-1):
    ndim = inputs.ndim
    dim = dim % ndim
    two = inputs.shape[dim]
    assert two % 2 == 0, "GLU needs an even size along the chunk dim"
    half = two // 2
    if dim == ndim - 1:
        return _glu_last_dim(inputs, half)
    return _glu_middle_dim(inputs, dim, half)


# ---------------------------------------------------------------------------
# Pure-JAX reference (mirrors the PyTorch module)
# ---------------------------------------------------------------------------
def glu_reference(inputs, dim=-1):
    outputs, gate = jnp.split(inputs, 2, axis=dim)
    return outputs * jax.nn.sigmoid(gate)


# ---------------------------------------------------------------------------
if __name__ == "__main__":
    key = jax.random.PRNGKey(0)
    k1, k2, k3, k4 = jax.random.split(key, 4)

    # Case 1: split along the last (feature) axis, f32, lane-aligned H = 128.
    x1 = jax.random.normal(k1, (2, 8, 256), jnp.float32)      # batch=2, seq=8, 2H=256
    y1 = jax.block_until_ready(glu_pallas(x1, dim=-1))
    r1 = glu_reference(x1, dim=-1)
    assert y1.shape == (2, 8, 128)
    np.testing.assert_allclose(np.asarray(y1), np.asarray(r1), rtol=1e-6, atol=1e-6)

    # Case 2: split along a middle axis (dim=1), e.g. channel dim of (B, 2C, T).
    # No transposes: trailing T stays on the lane axis.
    x2 = jax.random.normal(k2, (2, 64, 16), jnp.float32)       # B=2, 2C=64, T=16
    y2 = jax.block_until_ready(glu_pallas(x2, dim=1))
    r2 = glu_reference(x2, dim=1)
    assert y2.shape == (2, 32, 16)
    np.testing.assert_allclose(np.asarray(y2), np.asarray(r2), rtol=1e-6, atol=1e-6)

    # Case 3: split along dim=0.
    x3 = jax.random.normal(k3, (64, 4, 16), jnp.float32)       # 2C=64, B=4, T=16
    y3 = jax.block_until_ready(glu_pallas(x3, dim=0))
    r3 = glu_reference(x3, dim=0)
    assert y3.shape == (32, 4, 16)
    np.testing.assert_allclose(np.asarray(y3), np.asarray(r3), rtol=1e-6, atol=1e-6)

    # Case 4: bf16 input (f32 compute in-kernel, bf16 store).
    x4 = jax.random.normal(k4, (4, 8, 512), jnp.float32).astype(jnp.bfloat16)
    y4 = jax.block_until_ready(glu_pallas(x4, dim=-1))
    r4 = glu_reference(x4.astype(jnp.float32), dim=-1).astype(jnp.bfloat16)
    assert y4.shape == (4, 8, 256)
    np.testing.assert_allclose(np.asarray(y4, dtype=np.float32),
                               np.asarray(r4, dtype=np.float32),
                               rtol=2e-2, atol=2e-2)

    print("KERNEL_OK")
</pallas_src>

<mosaic_0001>
module attributes {stable_mosaic.version = 11 : i64} {
  func.func @_glu_split_kernel(%arg0: i32, %arg1: i32, %arg2: memref<16x128xf32, #tpu.memory_space<vmem>>, %arg3: memref<16x128xf32, #tpu.memory_space<vmem>>, %arg4: memref<16x128xf32, #tpu.memory_space<vmem>>) attributes {dimension_semantics = [#tpu.dimension_semantics<parallel>, #tpu.dimension_semantics<parallel>], iteration_bounds = array<i64: 1, 1>, scalar_prefetch = 0 : i64, scratch_operands = 0 : i64, tpu.core_type = #tpu.core_type<tc>, window_params = [{transform_indices = @transform_0, window_bounds = array<i64: 16, 128>}, {transform_indices = @transform_1, window_bounds = array<i64: 16, 128>}, {transform_indices = @transform_2, window_bounds = array<i64: 16, 128>}]} {
    %c0 = arith.constant 0 : index
    %c0_0 = arith.constant 0 : index
    %0 = vector.load %arg2[%c0, %c0_0] : memref<16x128xf32, #tpu.memory_space<vmem>>, vector<16x128xf32>
    %c0_1 = arith.constant 0 : index
    %c0_2 = arith.constant 0 : index
    %1 = vector.load %arg3[%c0_1, %c0_2] : memref<16x128xf32, #tpu.memory_space<vmem>>, vector<16x128xf32>
    %2 = arith.negf %1 : vector<16x128xf32>
    %3 = math.exp %2 : vector<16x128xf32>
    %cst = arith.constant 1.000000e+00 : f32
    %4 = vector.broadcast %cst : f32 to vector<16x128xf32>
    %5 = arith.addf %4, %3 : vector<16x128xf32>
    %6 = arith.divf %4, %5 : vector<16x128xf32>
    %7 = arith.mulf %0, %6 : vector<16x128xf32>
    %c0_3 = arith.constant 0 : index
    %c0_4 = arith.constant 0 : index
    %8 = vector.load %arg4[%c0_3, %c0_4] : memref<16x128xf32, #tpu.memory_space<vmem>>, vector<16x128xf32>
    tpu.vector_store %arg4[%c0_3, %c0_4], %7 {strides = array<i32>} : memref<16x128xf32, #tpu.memory_space<vmem>>, vector<16x128xf32>,
    return
  }
  func.func @transform_0(%arg0: i32, %arg1: i32) -> (i32, i32) {
    %c0_i32 = arith.constant 0 : i32
    return %arg0, %arg1 : i32, i32
  }
  func.func @transform_1(%arg0: i32, %arg1: i32) -> (i32, i32) {
    %c1_i32 = arith.constant 1 : i32
    %0 = arith.addi %arg1, %c1_i32 : i32
    %c0_i32 = arith.constant 0 : i32
    return %arg0, %0 : i32, i32
  }
  func.func @transform_2(%arg0: i32, %arg1: i32) -> (i32, i32) {
    %c0_i32 = arith.constant 0 : i32
    return %arg0, %arg1 : i32, i32
  }
}

</mosaic_0001>

<llo_original>
// kernel: tpu_custom_call.1
$region0: #{tpu_custom_call.1}
  #allocation0 [shape = 'u32[]', space=smem, size = 0x4, offset = 0x4, fixed_abs, tag = 'smem constant byte address 0x4 - core index']
  #allocation1 [shape = 'u32[144,128]{1,0:T(1,128)}', space=vmem, size = 0x12000, scoped, tag = 'internal scratch']
  %s0 = inlined_call_operand.hbm [shape: f32[16,256], index: 0, kind: input, shape index: {}]
  %s1 = inlined_call_operand.hbm [shape: f32[16,256], index: 1, kind: input, shape index: {}]
  %s2 = inlined_call_operand.hbm [shape: f32[16,128], index: 2, kind: output, shape index: {}]
  %s3 = sld [smem:[#allocation0]]
  $region26: #{tpu_custom_call.1} parent=0
    _
  %s5 = ssub.s32 1, %s3
  %s6 = scalar_select 0, %s5, %s3
  $region1: #{tpu_custom_call.1} parent=0
    #allocation2 [shape = 'u8[8192]{0}', space=vmem, size = 0x2000, scoped, tag = 'input window, operand 0, single buffered']
    #allocation3 [shape = 's32[1]{0}', space=sflag, size = 0x4, scoped, tag = 'scoped memory for tpu_custom_call.1']
    #allocation4 [shape = 's32[1]{0}', space=sflag, size = 0x4, scoped, tag = 'scoped memory for tpu_custom_call.1']
    #allocation5 [shape = 'u8[8192]{0}', space=vmem, size = 0x2000, scoped, tag = 'input window, operand 1, single buffered']
    #allocation6 [shape = 's32[1]{0}', space=sflag, size = 0x4, scoped, tag = 'scoped memory for tpu_custom_call.1']
    #allocation7 [shape = 'u8[8192]{0}', space=vmem, size = 0x2000, scoped, tag = 'output window, operand 0, single buffered']
    %7 = vsyncpa [#allocation3], 0
    %8 = vsyncpa [#allocation6], 0
    %9 = vsyncpa [#allocation4], 0
    // Predicated region
    $region2: #{tpu_custom_call.1} parent=1 // pred_check
      _
    $region3: #{tpu_custom_call.1} parent=1 // pred_check_branch
      %11 = sbr.rel (0) target = $region5
    $region4: #{tpu_custom_call.1} parent=1 // pred_region
      %s13 = ssub.s32 256, 256
      %14 = vsyncadd [#allocation3], %s13
      %s15 = sshll.u32 [#allocation2], 4
      %s16 = int_to_ptr.vmem [resolvable:$true] %s15
      %21 = dma.hbm_to_vmem [thread:$0]  %s0, 256, %s16, [#allocation3], 256, 128, 8
    $region5: #{tpu_custom_call.1} parent=1 // pred_fallthru
      _
    // Predicated region
    $region6: #{tpu_custom_call.1} parent=1 // pred_check
      _
    $region7: #{tpu_custom_call.1} parent=1 // pred_check_branch
      %23 = sbr.rel (0) target = $region9
    $region8: #{tpu_custom_call.1} parent=1 // pred_region
      %s24 = sadd.s32 0, 1
      %s26 = ssub.s32 256, 256
      %27 = vsyncadd [#allocation6], %s26
      %s28 = smul.addr %s24, 128
      %s29 = scalar_lea.hbm %s1, %s28
      %s30 = sshll.u32 [#allocation5], 4
      %s31 = int_to_ptr.vmem [resolvable:$true] %s30
      %36 = dma.hbm_to_vmem [thread:$0]  %s29, 256, %s31, [#allocation6], 256, 128, 8
    $region9: #{tpu_custom_call.1} parent=1 // pred_fallthru
      _
    // Predicated region
    $region10: #{tpu_custom_call.1} parent=1 // pred_check
      _
    $region11: #{tpu_custom_call.1} parent=1 // pred_check_branch
      %38 = sbr.rel (0) target = $region13
    $region12: #{tpu_custom_call.1} parent=1 // pred_region
      %39 = dma.done [#allocation3], 256
    $region13: #{tpu_custom_call.1} parent=1 // pred_fallthru
      _
    // Predicated region
    $region14: #{tpu_custom_call.1} parent=1 // pred_check
      _
    $region15: #{tpu_custom_call.1} parent=1 // pred_check_branch
      %41 = sbr.rel (0) target = $region17
    $region16: #{tpu_custom_call.1} parent=1 // pred_region
      %42 = dma.done [#allocation6], 256
    $region17: #{tpu_custom_call.1} parent=1 // pred_fallthru
      _
    %s43 = sadd.s32 0, 1
    %v44 = vld [vmem:[#allocation2] sm:$0xff]
    %v45 = vld [vmem:[#allocation2 + $0x8] sm:$0xff]
    %v46 = vld [vmem:[#allocation5] sm:$0xff]
    %v47 = vld [vmem:[#allocation5 + $0x8] sm:$0xff]
    %v48 = vxor.u32 %v46, 2147483648
    %v49 = vxor.u32 %v47, 2147483648
    %v50 = vmul.f32 %v48, 1.442695
    %v51 = vpow.pop %v50
    %v52 = vmul.f32 %v49, 1.442695
    %v53 = vpow.pop %v52
    %v54 = vadd.f32 %v51, 1.0
    %v55 = vadd.f32 %v53, 1.0
    %v56 = vrcp.pop %v54
    %v57 = vmul.f32 1.0, %v56
    %v58 = vrcp.pop %v55
    %v59 = vmul.f32 1.0, %v58
    %v60 = vmul.f32 %v44, %v57
    %v61 = vmul.f32 %v45, %v59
    %62 = vst [vmem:[#allocation7] sm:$0xff] %v60
    %63 = vst [vmem:[#allocation7 + $0x8] sm:$0xff] %v61
    // Predicated region
    $region18: #{tpu_custom_call.1} parent=1 // pred_check
      _
    $region19: #{tpu_custom_call.1} parent=1 // pred_check_branch
      %65 = sbr.rel (0) target = $region21
    $region20: #{tpu_custom_call.1} parent=1 // pred_region
      %s67 = ssub.s32 256, 256
      %68 = vsyncadd [#allocation4], %s67
      %s69 = sshll.u32 [#allocation7], 4
      %s70 = int_to_ptr.vmem [resolvable:$true] %s69
      %75 = dma.vmem_to_hbm [thread:$0]  %s70, 256, %s2, [#allocation4], 128, 128, 8
    $region21: #{tpu_custom_call.1} parent=1 // pred_fallthru
      _
    // Predicated region
    $region22: #{tpu_custom_call.1} parent=1 // pred_check
      _
    $region23: #{tpu_custom_call.1} parent=1 // pred_check_branch
      %77 = sbr.rel (0) target = $region25
    $region24: #{tpu_custom_call.1} parent=1 // pred_region
      %78 = dma.done [#allocation4], 256
    $region25: #{tpu_custom_call.1} parent=1 // pred_fallthru
      _
    %79 = vsyncpa [#allocation3], 1
    %80 = vsyncpa [#allocation6], 1
    %81 = vsyncpa [#allocation4], 1

</llo_original>
